<compile_context>
chip_gen: v6e
topology: v6e:2x2x1
jax: 0.10.0
libtpu: 0.0.40
codegen_flags: <defaults>
</compile_context>

<pallas_src>
import functools
import math

import jax
import jax.numpy as jnp
from jax.experimental import pallas as pl
from jax.experimental.pallas import tpu as pltpu


# ---------------------------------------------------------------------------
# Kernel
# ---------------------------------------------------------------------------
def _make_fused_kernel(num_hidden):
    """Fused twin-Q MLP: layer0 (3-way dot) -> `num_hidden` block-diag hidden
    layers (linear+ReLU) -> block-diag 2-column output head (no ReLU)."""

    def kernel(s_ref, a_ref, m_ref, w0s_ref, w0a_ref, w0m_ref, b0_ref, *refs):
        o_ref = refs[-1]
        params = refs[:-1]  # w1, b1, ..., w_h, b_h, w_out, b_out

        # Layer 0: avoids a materialized concat of [state, action, inferred_mdp].
        pre0 = (
            jnp.dot(s_ref[...], w0s_ref[...], preferred_element_type=jnp.float32)
            + jnp.dot(a_ref[...], w0a_ref[...], preferred_element_type=jnp.float32)
            + jnp.dot(m_ref[...], w0m_ref[...], preferred_element_type=jnp.float32)
            + b0_ref[...]
        )
        h = jnp.maximum(pre0, 0.0)

        # Block-diagonal hidden layers: one matmul services both Q branches.
        for i in range(num_hidden):
            w = params[2 * i][...]
            b = params[2 * i + 1][...]
            h = jnp.maximum(
                jnp.dot(h, w, preferred_element_type=jnp.float32) + b, 0.0
            )

        # Both 1-wide heads folded into a single (2H, 2) dot -> (batch, 2).
        w = params[2 * num_hidden][...]
        b = params[2 * num_hidden + 1][...]
        o_ref[...] = jnp.dot(h, w, preferred_element_type=jnp.float32) + b

    return kernel


# ---------------------------------------------------------------------------
# Wrapper
# ---------------------------------------------------------------------------
def _round_up(x, m):
    return ((x + m - 1) // m) * m


def critic_forward_pallas(state, action, inferred_mdp, fused):
    """Fused critic forward. Returns (q1, q2), each (batch, 1) float32."""
    batch, state_dim = state.shape
    action_dim = action.shape[1]
    latent_dim = inferred_mdp.shape[1]

    # Pad batch to a sublane multiple; tile over batch for large batches (v7x).
    padded = _round_up(batch, 8)
    if padded > 256:
        bb = 128
        padded = _round_up(batch, bb)
    else:
        bb = padded
    if padded != batch:
        pad = padded - batch
        state = jnp.pad(state, ((0, pad), (0, 0)))
        action = jnp.pad(action, ((0, pad), (0, 0)))
        inferred_mdp = jnp.pad(inferred_mdp, ((0, pad), (0, 0)))
    grid = (padded // bb,)

    num_hidden = len(fused["hidden"])
    kernel = _make_fused_kernel(num_hidden)

    flat_params = [fused["w0_s"], fused["w0_a"], fused["w0_m"], fused["b0"]]
    for w, b in fused["hidden"]:
        flat_params.append(w)
        flat_params.append(b)
    flat_params.append(fused["w_out"])
    flat_params.append(fused["b_out"])

    def batch_spec(dim):
        return pl.BlockSpec((bb, dim), lambda i: (i, 0))

    def whole_spec(arr):
        return pl.BlockSpec(arr.shape, lambda i: (0, 0))

    in_specs = [
        batch_spec(state_dim),
        batch_spec(action_dim),
        batch_spec(latent_dim),
    ] + [whole_spec(p) for p in flat_params]

    out = pl.pallas_call(
        kernel,
        out_shape=jax.ShapeDtypeStruct((padded, 2), jnp.float32),
        grid=grid,
        in_specs=in_specs,
        out_specs=pl.BlockSpec((bb, 2), lambda i: (i, 0)),
        compiler_params=pltpu.CompilerParams(
            dimension_semantics=("parallel",)
        ),
    )(state, action, inferred_mdp, *flat_params)

    out = out[:batch]
    return out[:, 0:1], out[:, 1:2]


@jax.jit
def critic_forward(state, action, inferred_mdp, fused):
    return critic_forward_pallas(state, action, inferred_mdp, fused)


# ---------------------------------------------------------------------------
# Parameters (PyTorch nn.Linear-style init), plus twin-Q fusion
# ---------------------------------------------------------------------------
def init_linear_params(key, in_dim, out_dim):
    """Mimic PyTorch nn.Linear default init (uniform +/- 1/sqrt(in))."""
    kw, kb = jax.random.split(key)
    bound = 1.0 / math.sqrt(in_dim)
    w = jax.random.uniform(kw, (in_dim, out_dim), jnp.float32, -bound, bound)
    b = jax.random.uniform(kb, (1, out_dim), jnp.float32, -bound, bound)
    return w, b


def make_critic_params(key, state_dim, action_dim, encoder_latent_dim, hid_sizes):
    in_dim = state_dim + action_dim + encoder_latent_dim
    dims = [in_dim] + list(hid_sizes) + [1]

    def build_branch(branch_key):
        ws, bs = [], []
        keys = jax.random.split(branch_key, len(dims) - 1)
        for i in range(len(dims) - 1):
            w, b = init_linear_params(keys[i], dims[i], dims[i + 1])
            ws.append(w)
            bs.append(b)
        return ws, bs

    k1, k2 = jax.random.split(key)
    return build_branch(k1), build_branch(k2)


def fuse_critic_params(q1_w, q1_b, q2_w, q2_b, state_dim, action_dim, latent_dim):
    """Pack both Q-branches into one set of fused weights (done once, offline)."""
    # Layer 0: concat along output dim, split along the input dim (so the kernel
    # never needs the concatenated [state, action, inferred_mdp] input).
    w0 = jnp.concatenate([q1_w[0], q2_w[0]], axis=1)  # (in, 2*H0)
    b0 = jnp.concatenate([q1_b[0], q2_b[0]], axis=1)  # (1, 2*H0)
    w0_s = w0[:state_dim]
    w0_a = w0[state_dim:state_dim + action_dim]
    w0_m = w0[state_dim + action_dim:]

    # Hidden layers: block-diagonal so one matmul runs both branches.
    hidden = []
    for w1, b1, w2, b2 in zip(q1_w[1:-1], q1_b[1:-1], q2_w[1:-1], q2_b[1:-1]):
        z = jnp.zeros_like(w1)
        w = jnp.block([[w1, z], [z, w2]])              # (2*Hin, 2*Hout)
        b = jnp.concatenate([b1, b2], axis=1)          # (1, 2*Hout)
        hidden.append((w, b))

    # Output heads folded into a single 2-column matrix.
    w_out = jnp.block(
        [[q1_w[-1], jnp.zeros_like(q1_w[-1])],
         [jnp.zeros_like(q2_w[-1]), q2_w[-1]]]
    )                                                  # (2*Hlast, 2)
    b_out = jnp.concatenate([q1_b[-1], q2_b[-1]], axis=1)  # (1, 2)

    return {
        "w0_s": w0_s, "w0_a": w0_a, "w0_m": w0_m, "b0": b0,
        "hidden": hidden, "w_out": w_out, "b_out": b_out,
    }


# ---------------------------------------------------------------------------
# Pure-JAX reference (matches the PyTorch module exactly)
# ---------------------------------------------------------------------------
def critic_forward_ref(state, action, inferred_mdp, q1_w, q1_b, q2_w, q2_b):
    cat_input = jnp.concatenate([state, action, inferred_mdp], axis=1)

    def branch(x, ws, bs):
        h = x
        for w, b in zip(ws[:-1], bs[:-1]):
            h = jnp.maximum(h @ w + b, 0.0)
        return h @ ws[-1] + bs[-1]

    return branch(cat_input, q1_w, q1_b), branch(cat_input, q2_w, q2_b)


# ---------------------------------------------------------------------------
if __name__ == "__main__":
    batch = 8
    state_dim = 16
    action_dim = 4
    encoder_latent_dim = 12
    hid_sizes = [32, 32]

    root = jax.random.PRNGKey(0)
    k_state, k_action, k_mdp, k_params = jax.random.split(root, 4)

    state = jax.random.normal(k_state, (batch, state_dim), jnp.float32)
    action = jax.random.normal(k_action, (batch, action_dim), jnp.float32)
    inferred_mdp = jax.random.normal(k_mdp, (batch, encoder_latent_dim), jnp.float32)

    (q1_w, q1_b), (q2_w, q2_b) = make_critic_params(
        k_params, state_dim, action_dim, encoder_latent_dim, hid_sizes
    )
    fused = fuse_critic_params(
        q1_w, q1_b, q2_w, q2_b, state_dim, action_dim, encoder_latent_dim
    )

    q1, q2 = critic_forward(state, action, inferred_mdp, fused)
    jax.block_until_ready((q1, q2))

    q1_ref, q2_ref = critic_forward_ref(
        state, action, inferred_mdp, q1_w, q1_b, q2_w, q2_b
    )
    assert q1.shape == (batch, 1) and q2.shape == (batch, 1)
    assert jnp.allclose(q1, q1_ref, atol=1e-5, rtol=1e-5)
    assert jnp.allclose(q2, q2_ref, atol=1e-5, rtol=1e-5)

    print("KERNEL_OK")
</pallas_src>

<mosaic_0001>
module attributes {stable_mosaic.version = 11 : i64} {
  func.func @kernel(%arg0: i32, %arg1: memref<8x16xf32, #tpu.memory_space<vmem>>, %arg2: memref<8x4xf32, #tpu.memory_space<vmem>>, %arg3: memref<8x12xf32, #tpu.memory_space<vmem>>, %arg4: memref<16x64xf32, #tpu.memory_space<vmem>>, %arg5: memref<4x64xf32, #tpu.memory_space<vmem>>, %arg6: memref<12x64xf32, #tpu.memory_space<vmem>>, %arg7: memref<1x64xf32, #tpu.memory_space<vmem>>, %arg8: memref<64x64xf32, #tpu.memory_space<vmem>>, %arg9: memref<1x64xf32, #tpu.memory_space<vmem>>, %arg10: memref<64x2xf32, #tpu.memory_space<vmem>>, %arg11: memref<1x2xf32, #tpu.memory_space<vmem>>, %arg12: memref<8x2xf32, #tpu.memory_space<vmem>>) attributes {dimension_semantics = [#tpu.dimension_semantics<parallel>], iteration_bounds = array<i64: 1>, scalar_prefetch = 0 : i64, scratch_operands = 0 : i64, tpu.core_type = #tpu.core_type<tc>, window_params = [{transform_indices = @transform_0, window_bounds = array<i64: 8, 16>}, {transform_indices = @transform_1, window_bounds = array<i64: 8, 4>}, {transform_indices = @transform_2, window_bounds = array<i64: 8, 12>}, {pipeline_mode = #tpu.pipeline_mode<synchronous>, transform_indices = @transform_3, window_bounds = array<i64: 16, 64>}, {pipeline_mode = #tpu.pipeline_mode<synchronous>, transform_indices = @transform_4, window_bounds = array<i64: 4, 64>}, {pipeline_mode = #tpu.pipeline_mode<synchronous>, transform_indices = @transform_5, window_bounds = array<i64: 12, 64>}, {pipeline_mode = #tpu.pipeline_mode<synchronous>, transform_indices = @transform_6, window_bounds = array<i64: 1, 64>}, {pipeline_mode = #tpu.pipeline_mode<synchronous>, transform_indices = @transform_7, window_bounds = array<i64: 64, 64>}, {pipeline_mode = #tpu.pipeline_mode<synchronous>, transform_indices = @transform_8, window_bounds = array<i64: 1, 64>}, {pipeline_mode = #tpu.pipeline_mode<synchronous>, transform_indices = @transform_9, window_bounds = array<i64: 64, 2>}, {pipeline_mode = #tpu.pipeline_mode<synchronous>, transform_indices = @transform_10, window_bounds = array<i64: 1, 2>}, {transform_indices = @transform_11, window_bounds = array<i64: 8, 2>}]} {
    %c0 = arith.constant 0 : index
    %c0_0 = arith.constant 0 : index
    %0 = vector.load %arg1[%c0, %c0_0] : memref<8x16xf32, #tpu.memory_space<vmem>>, vector<8x16xf32>
    %c0_1 = arith.constant 0 : index
    %c0_2 = arith.constant 0 : index
    %1 = vector.load %arg4[%c0_1, %c0_2] : memref<16x64xf32, #tpu.memory_space<vmem>>, vector<16x64xf32>
    %cst = arith.constant dense<0.000000e+00> : vector<8x64xf32>
    %2 = tpu.matmul %0, %1, %cst {dimension_numbers = #tpu.dot_dimension_numbers<[1], [0], [0], [1], [0, 0, 1, 1], [], []>} : vector<8x16xf32>, vector<16x64xf32>, vector<8x64xf32> -> vector<8x64xf32>
    %c0_3 = arith.constant 0 : index
    %c0_4 = arith.constant 0 : index
    %3 = vector.load %arg2[%c0_3, %c0_4] : memref<8x4xf32, #tpu.memory_space<vmem>>, vector<8x4xf32>
    %c0_5 = arith.constant 0 : index
    %c0_6 = arith.constant 0 : index
    %4 = vector.load %arg5[%c0_5, %c0_6] : memref<4x64xf32, #tpu.memory_space<vmem>>, vector<4x64xf32>
    %cst_7 = arith.constant dense<0.000000e+00> : vector<8x64xf32>
    %5 = tpu.matmul %3, %4, %cst_7 {dimension_numbers = #tpu.dot_dimension_numbers<[1], [0], [0], [1], [0, 0, 1, 1], [], []>} : vector<8x4xf32>, vector<4x64xf32>, vector<8x64xf32> -> vector<8x64xf32>
    %6 = arith.addf %2, %5 : vector<8x64xf32>
    %c0_8 = arith.constant 0 : index
    %c0_9 = arith.constant 0 : index
    %7 = vector.load %arg3[%c0_8, %c0_9] : memref<8x12xf32, #tpu.memory_space<vmem>>, vector<8x12xf32>
    %c0_10 = arith.constant 0 : index
    %c0_11 = arith.constant 0 : index
    %8 = vector.load %arg6[%c0_10, %c0_11] : memref<12x64xf32, #tpu.memory_space<vmem>>, vector<12x64xf32>
    %cst_12 = arith.constant dense<0.000000e+00> : vector<8x64xf32>
    %9 = tpu.matmul %7, %8, %cst_12 {dimension_numbers = #tpu.dot_dimension_numbers<[1], [0], [0], [1], [0, 0, 1, 1], [], []>} : vector<8x12xf32>, vector<12x64xf32>, vector<8x64xf32> -> vector<8x64xf32>
    %10 = arith.addf %6, %9 : vector<8x64xf32>
    %c0_13 = arith.constant 0 : index
    %c0_14 = arith.constant 0 : index
    %11 = vector.load %arg7[%c0_13, %c0_14] : memref<1x64xf32, #tpu.memory_space<vmem>>, vector<1x64xf32>
    %12 = vector.broadcast %11 : vector<1x64xf32> to vector<8x64xf32>
    %13 = arith.addf %10, %12 : vector<8x64xf32>
    %cst_15 = arith.constant 0.000000e+00 : f32
    %14 = vector.broadcast %cst_15 : f32 to vector<8x64xf32>
    %15 = arith.maximumf %13, %14 : vector<8x64xf32>
    %c0_16 = arith.constant 0 : index
    %c0_17 = arith.constant 0 : index
    %16 = vector.load %arg8[%c0_16, %c0_17] : memref<64x64xf32, #tpu.memory_space<vmem>>, vector<64x64xf32>
    %c0_18 = arith.constant 0 : index
    %c0_19 = arith.constant 0 : index
    %17 = vector.load %arg9[%c0_18, %c0_19] : memref<1x64xf32, #tpu.memory_space<vmem>>, vector<1x64xf32>
    %cst_20 = arith.constant dense<0.000000e+00> : vector<8x64xf32>
    %18 = tpu.matmul %15, %16, %cst_20 {dimension_numbers = #tpu.dot_dimension_numbers<[1], [0], [0], [1], [0, 0, 1, 1], [], []>} : vector<8x64xf32>, vector<64x64xf32>, vector<8x64xf32> -> vector<8x64xf32>
    %19 = vector.broadcast %17 : vector<1x64xf32> to vector<8x64xf32>
    %20 = arith.addf %18, %19 : vector<8x64xf32>
    %cst_21 = arith.constant 0.000000e+00 : f32
    %21 = vector.broadcast %cst_21 : f32 to vector<8x64xf32>
    %22 = arith.maximumf %20, %21 : vector<8x64xf32>
    %c0_22 = arith.constant 0 : index
    %c0_23 = arith.constant 0 : index
    %23 = vector.load %arg10[%c0_22, %c0_23] : memref<64x2xf32, #tpu.memory_space<vmem>>, vector<64x2xf32>
    %c0_24 = arith.constant 0 : index
    %c0_25 = arith.constant 0 : index
    %24 = vector.load %arg11[%c0_24, %c0_25] : memref<1x2xf32, #tpu.memory_space<vmem>>, vector<1x2xf32>
    %cst_26 = arith.constant dense<0.000000e+00> : vector<8x2xf32>
    %25 = tpu.matmul %22, %23, %cst_26 {dimension_numbers = #tpu.dot_dimension_numbers<[1], [0], [0], [1], [0, 0, 1, 1], [], []>} : vector<8x64xf32>, vector<64x2xf32>, vector<8x2xf32> -> vector<8x2xf32>
    %26 = vector.broadcast %24 : vector<1x2xf32> to vector<8x2xf32>
    %27 = arith.addf %25, %26 : vector<8x2xf32>
    %c0_27 = arith.constant 0 : index
    %c0_28 = arith.constant 0 : index
    %28 = vector.load %arg12[%c0_27, %c0_28] : memref<8x2xf32, #tpu.memory_space<vmem>>, vector<8x2xf32>
    tpu.vector_store %arg12[%c0_27, %c0_28], %27 {strides = array<i32>} : memref<8x2xf32, #tpu.memory_space<vmem>>, vector<8x2xf32>,
    return
  }
  func.func @transform_0(%arg0: i32) -> (i32, i32) {
    %c0_i32 = arith.constant 0 : i32
    %c0_i32_0 = arith.constant 0 : i32
    return %arg0, %c0_i32 : i32, i32
  }
  func.func @transform_1(%arg0: i32) -> (i32, i32) {
    %c0_i32 = arith.constant 0 : i32
    %c0_i32_0 = arith.constant 0 : i32
    return %arg0, %c0_i32 : i32, i32
  }
  func.func @transform_2(%arg0: i32) -> (i32, i32) {
    %c0_i32 = arith.constant 0 : i32
    %c0_i32_0 = arith.constant 0 : i32
    return %arg0, %c0_i32 : i32, i32
  }
  func.func @transform_3(%arg0: i32) -> (i32, i32) {
    %c0_i32 = arith.constant 0 : i32
    %c0_i32_0 = arith.constant 0 : i32
    %c0_i32_1 = arith.constant 0 : i32
    return %c0_i32, %c0_i32_0 : i32, i32
  }
  func.func @transform_4(%arg0: i32) -> (i32, i32) {
    %c0_i32 = arith.constant 0 : i32
    %c0_i32_0 = arith.constant 0 : i32
    %c0_i32_1 = arith.constant 0 : i32
    return %c0_i32, %c0_i32_0 : i32, i32
  }
  func.func @transform_5(%arg0: i32) -> (i32, i32) {
    %c0_i32 = arith.constant 0 : i32
    %c0_i32_0 = arith.constant 0 : i32
    %c0_i32_1 = arith.constant 0 : i32
    return %c0_i32, %c0_i32_0 : i32, i32
  }
  func.func @transform_6(%arg0: i32) -> (i32, i32) {
    %c0_i32 = arith.constant 0 : i32
    %c0_i32_0 = arith.constant 0 : i32
    %c0_i32_1 = arith.constant 0 : i32
    return %c0_i32, %c0_i32_0 : i32, i32
  }
  func.func @transform_7(%arg0: i32) -> (i32, i32) {
    %c0_i32 = arith.constant 0 : i32
    %c0_i32_0 = arith.constant 0 : i32
    %c0_i32_1 = arith.constant 0 : i32
    return %c0_i32, %c0_i32_0 : i32, i32
  }
  func.func @transform_8(%arg0: i32) -> (i32, i32) {
    %c0_i32 = arith.constant 0 : i32
    %c0_i32_0 = arith.constant 0 : i32
    %c0_i32_1 = arith.constant 0 : i32
    return %c0_i32, %c0_i32_0 : i32, i32
  }
  func.func @transform_9(%arg0: i32) -> (i32, i32) {
    %c0_i32 = arith.constant 0 : i32
    %c0_i32_0 = arith.constant 0 : i32
    %c0_i32_1 = arith.constant 0 : i32
    return %c0_i32, %c0_i32_0 : i32, i32
  }
  func.func @transform_10(%arg0: i32) -> (i32, i32) {
    %c0_i32 = arith.constant 0 : i32
    %c0_i32_0 = arith.constant 0 : i32
    %c0_i32_1 = arith.constant 0 : i32
    return %c0_i32, %c0_i32_0 : i32, i32
  }
  func.func @transform_11(%arg0: i32) -> (i32, i32) {
    %c0_i32 = arith.constant 0 : i32
    %c0_i32_0 = arith.constant 0 : i32
    return %arg0, %c0_i32 : i32, i32
  }
}

</mosaic_0001>

<llo_original>
// kernel: critic_forward.1
$region0: #{critic_forward.1}
  #allocation0 [shape = 'u32[]', space=smem, size = 0x4, offset = 0x4, fixed_abs, tag = 'smem constant byte address 0x4 - core index']
  #allocation1 [shape = 'u32[144,128]{1,0:T(1,128)}', space=vmem, size = 0x12000, scoped, tag = 'internal scratch']
  %s0 = inlined_call_operand.hbm [shape: f32[8,16], index: 0, kind: input, shape index: {}]
  %s1 = inlined_call_operand.vmem [shape: f32[8,4], index: 1, kind: input, shape index: {}]
  %s2 = inlined_call_operand.hbm [shape: f32[8,12], index: 2, kind: input, shape index: {}]
  %s3 = inlined_call_operand.vmem [shape: f32[16,64], index: 3, kind: input, shape index: {}]
  %s4 = inlined_call_operand.vmem [shape: f32[4,64], index: 4, kind: input, shape index: {}]
  %s5 = inlined_call_operand.hbm [shape: f32[12,64], index: 5, kind: input, shape index: {}]
  %s6 = inlined_call_operand.vmem [shape: f32[1,64], index: 6, kind: input, shape index: {}]
  %s7 = inlined_call_operand.vmem [shape: f32[64,64], index: 7, kind: input, shape index: {}]
  %s8 = inlined_call_operand.vmem [shape: f32[1,64], index: 8, kind: input, shape index: {}]
  %s9 = inlined_call_operand.vmem [shape: f32[64,2], index: 9, kind: input, shape index: {}]
  %s10 = inlined_call_operand.hbm [shape: f32[1,2], index: 10, kind: input, shape index: {}]
  %s11 = inlined_call_operand.vmem [shape: f32[8,2], index: 11, kind: output, shape index: {}]
  %s12 = sld [smem:[#allocation0]]
  $region70: #{critic_forward.1} parent=0
    _
  %s14 = ssub.s32 1, %s12
  %s15 = scalar_select 0, %s14, %s12
  $region1: #{critic_forward.1} parent=0
    #allocation2 [shape = 'u8[4096]{0}', space=vmem, size = 0x1000, scoped, tag = 'input window, operand 0, single buffered']
    #allocation3 [shape = 's32[1]{0}', space=sflag, size = 0x4, scoped, tag = 'scoped memory for critic_forward.1']
    #allocation4 [shape = 'u8[4096]{0}', space=vmem, size = 0x1000, scoped, tag = 'input window, operand 2, single buffered']
    #allocation5 [shape = 's32[1]{0}', space=sflag, size = 0x4, scoped, tag = 'scoped memory for critic_forward.1']
    #allocation6 [shape = 'u8[8192]{0}', space=vmem, size = 0x2000, scoped, tag = 'input window, operand 5, single buffered']
    #allocation7 [shape = 'u8[512]{0}', space=vmem, size = 0x400, scoped, tag = 'input window, operand 10, single buffered']
    #allocation8 [shape = 's32[1]{0}', space=sflag, size = 0x4, scoped, tag = 'scoped memory for critic_forward.1']
    %16 = vsyncpa [#allocation3], 0
    %17 = vsyncpa [#allocation5], 0
    %18 = vsyncpa [#allocation8], 0
    // Predicated region
    $region2: #{critic_forward.1} parent=1 // pred_check
      _
    $region3: #{critic_forward.1} parent=1 // pred_check_branch
      %20 = sbr.rel (0) target = $region5
    $region4: #{critic_forward.1} parent=1 // pred_region
      %s22 = ssub.s32 128, 128
      %23 = vsyncadd [#allocation3], %s22
      %s25 = sshll.u32 [#allocation2], 4
      %s26 = int_to_ptr.vmem [resolvable:$true] %s25
      %28 = dma.hbm_to_vmem [thread:$0]  %s0, 128, %s26, [#allocation3]
    $region5: #{critic_forward.1} parent=1 // pred_fallthru
      _
    // Predicated region
    $region6: #{critic_forward.1} parent=1 // pred_check
      _
    $region7: #{critic_forward.1} parent=1 // pred_check_branch
      %30 = sbr.rel (0) target = $region9
    $region8: #{critic_forward.1} parent=1 // pred_region
      _
    $region9: #{critic_forward.1} parent=1 // pred_fallthru
      _
    // Predicated region
    $region10: #{critic_forward.1} parent=1 // pred_check
      _
    $region11: #{critic_forward.1} parent=1 // pred_check_branch
      %32 = sbr.rel (0) target = $region13
    $region12: #{critic_forward.1} parent=1 // pred_region
      %s34 = ssub.s32 128, 128
      %35 = vsyncadd [#allocation5], %s34
      %s37 = sshll.u32 [#allocation4], 4
      %s38 = int_to_ptr.vmem [resolvable:$true] %s37
      %40 = dma.hbm_to_vmem [thread:$0]  %s2, 128, %s38, [#allocation5]
    $region13: #{critic_forward.1} parent=1 // pred_fallthru
      _
    // Predicated region
    $region14: #{critic_forward.1} parent=1 // pred_check
      _
    $region15: #{critic_forward.1} parent=1 // pred_check_branch
      %42 = sbr.rel (0) target = $region17
    $region16: #{critic_forward.1} parent=1 // pred_region
      _
    $region17: #{critic_forward.1} parent=1 // pred_fallthru
      _
    // Predicated region
    $region18: #{critic_forward.1} parent=1 // pred_check
      _
    $region19: #{critic_forward.1} parent=1 // pred_check_branch
      %44 = sbr.rel (0) target = $region21
    $region20: #{critic_forward.1} parent=1 // pred_region
      _
    $region21: #{critic_forward.1} parent=1 // pred_fallthru
      _
    // Predicated region
    $region22: #{critic_forward.1} parent=1 // pred_check
      _
    $region23: #{critic_forward.1} parent=1 // pred_check_branch
      %46 = sbr.rel (0) target = $region25
    $region24: #{critic_forward.1} parent=1 // pred_region
      %s48 = ssub.s32 256, 256
      %49 = vsyncadd [#allocation5], %s48
      %s50 = sshll.u32 [#allocation6], 4
      %s51 = int_to_ptr.vmem [resolvable:$true] %s50
      %56 = dma.hbm_to_vmem [thread:$0]  %s5, 256, %s51, [#allocation5], 128, 128, 8
    $region25: #{critic_forward.1} parent=1 // pred_fallthru
      _
    // Predicated region
    $region26: #{critic_forward.1} parent=1 // pred_check
      _
    $region27: #{critic_forward.1} parent=1 // pred_check_branch
      %58 = sbr.rel (0) target = $region29
    $region28: #{critic_forward.1} parent=1 // pred_region
      _
    $region29: #{critic_forward.1} parent=1 // pred_fallthru
      _
    // Predicated region
    $region30: #{critic_forward.1} parent=1 // pred_check
      _
    $region31: #{critic_forward.1} parent=1 // pred_check_branch
      %60 = sbr.rel (0) target = $region33
    $region32: #{critic_forward.1} parent=1 // pred_region
      _
    $region33: #{critic_forward.1} parent=1 // pred_fallthru
      _
    // Predicated region
    $region34: #{critic_forward.1} parent=1 // pred_check
      _
    $region35: #{critic_forward.1} parent=1 // pred_check_branch
      %62 = sbr.rel (0) target = $region37
    $region36: #{critic_forward.1} parent=1 // pred_region
      _
    $region37: #{critic_forward.1} parent=1 // pred_fallthru
      _
    // Predicated region
    $region38: #{critic_forward.1} parent=1 // pred_check
      _
    $region39: #{critic_forward.1} parent=1 // pred_check_branch
      %64 = sbr.rel (0) target = $region41
    $region40: #{critic_forward.1} parent=1 // pred_region
      _
    $region41: #{critic_forward.1} parent=1 // pred_fallthru
      _
    // Predicated region
    $region42: #{critic_forward.1} parent=1 // pred_check
      _
    $region43: #{critic_forward.1} parent=1 // pred_check_branch
      %66 = sbr.rel (0) target = $region45
    $region44: #{critic_forward.1} parent=1 // pred_region
      %s68 = ssub.s32 16, 16
      %69 = vsyncadd [#allocation8], %s68
      %s71 = sshll.u32 [#allocation7], 4
      %s72 = int_to_ptr.vmem [resolvable:$true] %s71
      %74 = dma.hbm_to_vmem [thread:$0]  %s10, 16, %s72, [#allocation8]
    $region45: #{critic_forward.1} parent=1 // pred_fallthru
      _
    // Predicated region
    $region46: #{critic_forward.1} parent=1 // pred_check
      _
    $region47: #{critic_forward.1} parent=1 // pred_check_branch
      %76 = sbr.rel (0) target = $region49
    $region48: #{critic_forward.1} parent=1 // pred_region
      %77 = dma.done [#allocation3], 128
    $region49: #{critic_forward.1} parent=1 // pred_fallthru
      _
    // Predicated region
    $region50: #{critic_forward.1} parent=1 // pred_check
      _
    $region51: #{critic_forward.1} parent=1 // pred_check_branch
      %79 = sbr.rel (0) target = $region53
    $region52: #{critic_forward.1} parent=1 // pred_region
      %80 = dma.done [#allocation5], 128
    $region53: #{critic_forward.1} parent=1 // pred_fallthru
      _
    // Predicated region
    $region54: #{critic_forward.1} parent=1 // pred_check
      _
    $region55: #{critic_forward.1} parent=1 // pred_check_branch
      %82 = sbr.rel (0) target = $region57
    $region56: #{critic_forward.1} parent=1 // pred_region
      %83 = dma.done [#allocation5], 256
    $region57: #{critic_forward.1} parent=1 // pred_fallthru
      _
    // Predicated region
    $region58: #{critic_forward.1} parent=1 // pred_check
      _
    $region59: #{critic_forward.1} parent=1 // pred_check_branch
      %85 = sbr.rel (0) target = $region61
    $region60: #{critic_forward.1} parent=1 // pred_region
      %86 = dma.done [#allocation8], 16
    $region61: #{critic_forward.1} parent=1 // pred_fallthru
      _
    %v87 = vld [vmem:[#allocation2] sm:$0xff]
    %v88 = vld [vmem:[%s3] sm:$0xff]
    %v89 = vld [vmem:[%s3 + $0x8] sm:$0xff]
    %v90 = vld [vmem:[%s1] sm:$0xff]
    %v91 = vld [vmem:[%s4] sm:$0xf]
    %vm92 = vcmask 31744
    %v94 = vsel %vm92, %v90, 0
    %vm96 = vcmask 1043456
    %v98 = vsel %vm96, %v91, 0
    %100 = vmatprep.subr.mxu0 0.0
    %101 = vmatpush1.msra.mxu0 0.0
    %102 = vmatprep.subr.mxu0 0.0
    %103 = vmatpush1.msra.mxu0 0.0
    %104 = vmatprep.subr.mxu0 0.0
    %105 = vmatpush1.msra.mxu0 0.0
    %106 = vmatprep.subr.mxu0 0.0
    %107 = vmatpush1.msra.mxu0 0.0
    %108 = vmatprep.subr.mxu0 0.0
    %109 = vmatpush1.msra.mxu0 0.0
    %110 = vmatprep.subr.mxu0 0.0
    %111 = vmatpush1.msra.mxu0 0.0
    %112 = vmatprep.subr.mxu0 0.0
    %113 = vmatpush1.msra.mxu0 0.0
    %114 = vmatprep.subr.mxu0 0.0
    %115 = vmatpush1.msra.mxu0 0.0
    %116 = vmatprep.subr.mxu0 0.0
    %117 = vmatpush1.msra.mxu0 0.0
    %118 = vmatprep.subr.mxu0 0.0
    %119 = vmatpush1.msra.mxu0 0.0
    %120 = vmatprep.subr.mxu0 0.0
    %121 = vmatpush1.msra.mxu0 0.0
    %122 = vmatprep.subr.mxu0 0.0
    %123 = vmatpush1.msra.mxu0 0.0
    %124 = vmatprep.subr.mxu0 0.0
    %125 = vmatpush1.msra.mxu0 0.0
    %126 = vmatprep.subr.mxu0 0.0
    %127 = vmatpush1.msra.mxu0 0.0
    %128 = vmatprep.subr.mxu0 0.0
    %129 = vmatpush1.msra.mxu0 0.0
    %130 = vmatprep.subr.mxu0 0.0
    %131 = vmatpush1.msra.mxu0 %v98
    %132 = vmatprep.subr.mxu0 0.0
    %133 = vmatpush2.msra.mxu0 0.0
    %134 = vmatprep.subr.mxu0 0.0
    %135 = vmatpush2.msra.mxu0 0.0
    %136 = vmatprep.subr.mxu0 0.0
    %137 = vmatpush2.msra.mxu0 0.0
    %138 = vmatprep.subr.mxu0 0.0
    %139 = vmatpush2.msra.mxu0 0.0
    %140 = vmatprep.subr.mxu0 0.0
    %141 = vmatpush2.msra.mxu0 0.0
    %142 = vmatprep.subr.mxu0 0.0
    %143 = vmatpush2.msra.mxu0 0.0
    %144 = vmatprep.subr.mxu0 0.0
    %145 = vmatpush2.msra.mxu0 0.0
    %146 = vmatprep.subr.mxu0 0.0
    %147 = vmatpush2.msra.mxu0 0.0
    %148 = vmatprep.subr.mxu0 0.0
    %149 = vmatpush2.msra.mxu0 0.0
    %150 = vmatprep.subr.mxu0 0.0
    %151 = vmatpush2.msra.mxu0 0.0
    %152 = vmatprep.subr.mxu0 0.0
    %153 = vmatpush2.msra.mxu0 0.0
    %154 = vmatprep.subr.mxu0 0.0
    %155 = vmatpush2.msra.mxu0 0.0
    %156 = vmatprep.subr.mxu0 0.0
    %157 = vmatpush2.msra.mxu0 0.0
    %158 = vmatprep.subr.mxu0 0.0
    %159 = vmatpush2.msra.mxu0 0.0
    %160 = vmatprep.subr.mxu0 0.0
    %161 = vmatpush2.msra.mxu0 0.0
    %162 = vmatprep.subr.mxu0 0.0
    %163 = vmatpush2.msra.mxu0 0.0
    %164 = vmatprep.mubr.f32.mxu0 0.0
    %165 = vmatmul.mubr.f32.gmra.mxu0 %v94
    %v166 = vpop.f32.mrf.mxu0
    %v167 = vadd.f32 0.0, %v166
    %v168 = vpop.f32.mrf.mxu0
    %169 = vdwg.mxu0
    %vm170 = vcmask 130048
    %v172 = vsel %vm170, %v87, 0
    %174 = vmatprep.subr.mxu0 0.0
    %175 = vmatpush1.msra.mxu0 0.0
    %176 = vmatprep.subr.mxu0 0.0
    %177 = vmatpush1.msra.mxu0 0.0
    %178 = vmatprep.subr.mxu0 0.0
    %179 = vmatpush1.msra.mxu0 0.0
    %180 = vmatprep.subr.mxu0 0.0
    %181 = vmatpush1.msra.mxu0 0.0
    %182 = vmatprep.subr.mxu0 0.0
    %183 = vmatpush1.msra.mxu0 0.0
    %184 = vmatprep.subr.mxu0 0.0
    %185 = vmatpush1.msra.mxu0 0.0
    %186 = vmatprep.subr.mxu0 0.0
    %187 = vmatpush1.msra.mxu0 0.0
    %188 = vmatprep.subr.mxu0 0.0
    %189 = vmatpush1.msra.mxu0 0.0
    %190 = vmatprep.subr.mxu0 0.0
    %191 = vmatpush1.msra.mxu0 0.0
    %192 = vmatprep.subr.mxu0 0.0
    %193 = vmatpush1.msra.mxu0 0.0
    %194 = vmatprep.subr.mxu0 0.0
    %195 = vmatpush1.msra.mxu0 0.0
    %196 = vmatprep.subr.mxu0 0.0
    %197 = vmatpush1.msra.mxu0 0.0
    %198 = vmatprep.subr.mxu0 0.0
    %199 = vmatpush1.msra.mxu0 0.0
    %200 = vmatprep.subr.mxu0 0.0
    %201 = vmatpush1.msra.mxu0 0.0
    %202 = vmatprep.subr.mxu0 0.0
    %203 = vmatpush1.msra.mxu0 %v89
    %204 = vmatprep.subr.mxu0 0.0
    %205 = vmatpush1.msra.mxu0 %v88
    %206 = vmatprep.subr.mxu0 0.0
    %207 = vmatpush2.msra.mxu0 0.0
    %208 = vmatprep.subr.mxu0 0.0
    %209 = vmatpush2.msra.mxu0 0.0
    %210 = vmatprep.subr.mxu0 0.0
    %211 = vmatpush2.msra.mxu0 0.0
    %212 = vmatprep.subr.mxu0 0.0
    %213 = vmatpush2.msra.mxu0 0.0
    %214 = vmatprep.subr.mxu0 0.0
    %215 = vmatpush2.msra.mxu0 0.0
    %216 = vmatprep.subr.mxu0 0.0
    %217 = vmatpush2.msra.mxu0 0.0
    %218 = vmatprep.subr.mxu0 0.0
    %219 = vmatpush2.msra.mxu0 0.0
    %220 = vmatprep.subr.mxu0 0.0
    %221 = vmatpush2.msra.mxu0 0.0
    %222 = vmatprep.subr.mxu0 0.0
    %223 = vmatpush2.msra.mxu0 0.0
    %224 = vmatprep.subr.mxu0 0.0
    %225 = vmatpush2.msra.mxu0 0.0
    %226 = vmatprep.subr.mxu0 0.0
    %227 = vmatpush2.msra.mxu0 0.0
    %228 = vmatprep.subr.mxu0 0.0
    %229 = vmatpush2.msra.mxu0 0.0
    %230 = vmatprep.subr.mxu0 0.0
    %231 = vmatpush2.msra.mxu0 0.0
    %232 = vmatprep.subr.mxu0 0.0
    %233 = vmatpush2.msra.mxu0 0.0
    %234 = vmatprep.subr.mxu0 0.0
    %235 = vmatpush2.msra.mxu0 0.0
    %236 = vmatprep.subr.mxu0 0.0
    %237 = vmatpush2.msra.mxu0 0.0
    %238 = vmatprep.mubr.f32.mxu0 0.0
    %239 = vmatmul.mubr.f32.gmra.mxu0 %v172
    %v240 = vpop.f32.mrf.mxu0
    %v241 = vadd.f32 %v167, %v240
    %v242 = vpop.f32.mrf.mxu0
    %243 = vdwg.mxu0
    %v244 = vld [vmem:[#allocation4] sm:$0xff]
    %v245 = vld [vmem:[#allocation6] sm:$0xff]
    %v246 = vld [vmem:[#allocation6 + $0x8] sm:$0xf]
    %vm247 = vcmask 97280
    %v249 = vsel %vm247, %v244, 0
    %v252 = vsel %vm96, %v246, 0
    %254 = vmatprep.subr.mxu0 0.0
    %255 = vmatpush1.msra.mxu0 0.0
    %256 = vmatprep.subr.mxu0 0.0
    %257 = vmatpush1.msra.mxu0 0.0
    %258 = vmatprep.subr.mxu0 0.0
    %259 = vmatpush1.msra.mxu0 0.0
    %260 = vmatprep.subr.mxu0 0.0
    %261 = vmatpush1.msra.mxu0 0.0
    %262 = vmatprep.subr.mxu0 0.0
    %263 = vmatpush1.msra.mxu0 0.0
    %264 = vmatprep.subr.mxu0 0.0
    %265 = vmatpush1.msra.mxu0 0.0
    %266 = vmatprep.subr.mxu0 0.0
    %267 = vmatpush1.msra.mxu0 0.0
    %268 = vmatprep.subr.mxu0 0.0
    %269 = vmatpush1.msra.mxu0 0.0
    %270 = vmatprep.subr.mxu0 0.0
    %271 = vmatpush1.msra.mxu0 0.0
    %272 = vmatprep.subr.mxu0 0.0
    %273 = vmatpush1.msra.mxu0 0.0
    %274 = vmatprep.subr.mxu0 0.0
    %275 = vmatpush1.msra.mxu0 0.0
    %276 = vmatprep.subr.mxu0 0.0
    %277 = vmatpush1.msra.mxu0 0.0
    %278 = vmatprep.subr.mxu0 0.0
    %279 = vmatpush1.msra.mxu0 0.0
    %280 = vmatprep.subr.mxu0 0.0
    %281 = vmatpush1.msra.mxu0 0.0
    %282 = vmatprep.subr.mxu0 0.0
    %283 = vmatpush1.msra.mxu0 %v252
    %284 = vmatprep.subr.mxu0 0.0
    %285 = vmatpush1.msra.mxu0 %v245
    %286 = vmatprep.subr.mxu0 0.0
    %287 = vmatpush2.msra.mxu0 0.0
    %288 = vmatprep.subr.mxu0 0.0
    %289 = vmatpush2.msra.mxu0 0.0
    %290 = vmatprep.subr.mxu0 0.0
    %291 = vmatpush2.msra.mxu0 0.0
    %292 = vmatprep.subr.mxu0 0.0
    %293 = vmatpush2.msra.mxu0 0.0
    %294 = vmatprep.subr.mxu0 0.0
    %295 = vmatpush2.msra.mxu0 0.0
    %296 = vmatprep.subr.mxu0 0.0
    %297 = vmatpush2.msra.mxu0 0.0
    %298 = vmatprep.subr.mxu0 0.0
    %299 = vmatpush2.msra.mxu0 0.0
    %300 = vmatprep.subr.mxu0 0.0
    %301 = vmatpush2.msra.mxu0 0.0
    %302 = vmatprep.subr.mxu0 0.0
    %303 = vmatpush2.msra.mxu0 0.0
    %304 = vmatprep.subr.mxu0 0.0
    %305 = vmatpush2.msra.mxu0 0.0
    %306 = vmatprep.subr.mxu0 0.0
    %307 = vmatpush2.msra.mxu0 0.0
    %308 = vmatprep.subr.mxu0 0.0
    %309 = vmatpush2.msra.mxu0 0.0
    %310 = vmatprep.subr.mxu0 0.0
    %311 = vmatpush2.msra.mxu0 0.0
    %312 = vmatprep.subr.mxu0 0.0
    %313 = vmatpush2.msra.mxu0 0.0
    %314 = vmatprep.subr.mxu0 0.0
    %315 = vmatpush2.msra.mxu0 0.0
    %316 = vmatprep.subr.mxu0 0.0
    %317 = vmatpush2.msra.mxu0 0.0
    %318 = vmatprep.mubr.f32.mxu0 0.0
    %319 = vmatmul.mubr.f32.gmra.mxu0 %v249
    %v320 = vpop.f32.mrf.mxu0
    %v321 = vadd.f32 0.0, %v320
    %v322 = vpop.f32.mrf.mxu0
    %323 = vdwg.mxu0
    %v324 = vadd.f32 %v241, %v321
    %v325 = vld [vmem:[%s6] sm:$0x1]
    %v327 = vlaneseq
    %v328 = vshrl.u32 %v327, 7
    %v329 = vsub.s32 0, %v328
    %v330 = vrot.slane %v325, %v329
    %v332 = vadd.f32 %v324, %v330
    %v333 = vmax.f32 %v332, 0.0
    %v334 = vld [vmem:[%s7] sm:$0xff]
    %v335 = vld [vmem:[%s7 + $0x8] sm:$0xff]
    %v336 = vld [vmem:[%s7 + $0x10] sm:$0xff]
    %v337 = vld [vmem:[%s7 + $0x18] sm:$0xff]
    %v338 = vld [vmem:[%s7 + $0x20] sm:$0xff]
    %v339 = vld [vmem:[%s7 + $0x28] sm:$0xff]
    %v340 = vld [vmem:[%s7 + $0x30] sm:$0xff]
    %v341 = vld [vmem:[%s7 + $0x38] sm:$0xff]
    %v342 = vld [vmem:[%s8] sm:$0x1]
    %v344 = vlaneseq
    %v345 = vshrl.u32 %v344, 7
    %v346 = vsub.s32 0, %v345
    %v347 = vrot.slane %v342, %v346
    %vm349 = vcmask 523264
    %v351 = vsel %vm349, %v333, 0
    %353 = vmatprep.subr.mxu0 0.0
    %354 = vmatpush1.msra.mxu0 0.0
    %355 = vmatprep.subr.mxu0 0.0
    %356 = vmatpush1.msra.mxu0 0.0
    %357 = vmatprep.subr.mxu0 0.0
    %358 = vmatpush1.msra.mxu0 0.0
    %359 = vmatprep.subr.mxu0 0.0
    %360 = vmatpush1.msra.mxu0 0.0
    %361 = vmatprep.subr.mxu0 0.0
    %362 = vmatpush1.msra.mxu0 0.0
    %363 = vmatprep.subr.mxu0 0.0
    %364 = vmatpush1.msra.mxu0 0.0
    %365 = vmatprep.subr.mxu0 0.0
    %366 = vmatpush1.msra.mxu0 0.0
    %367 = vmatprep.subr.mxu0 0.0
    %368 = vmatpush1.msra.mxu0 0.0
    %369 = vmatprep.subr.mxu0 0.0
    %370 = vmatpush1.msra.mxu0 %v341
    %371 = vmatprep.subr.mxu0 0.0
    %372 = vmatpush1.msra.mxu0 %v340
    %373 = vmatprep.subr.mxu0 0.0
    %374 = vmatpush1.msra.mxu0 %v339
    %375 = vmatprep.subr.mxu0 0.0
    %376 = vmatpush1.msra.mxu0 %v338
    %377 = vmatprep.subr.mxu0 0.0
    %378 = vmatpush1.msra.mxu0 %v337
    %379 = vmatprep.subr.mxu0 0.0
    %380 = vmatpush1.msra.mxu0 %v336
    %381 = vmatprep.subr.mxu0 0.0
    %382 = vmatpush1.msra.mxu0 %v335
    %383 = vmatprep.subr.mxu0 0.0
    %384 = vmatpush1.msra.mxu0 %v334
    %385 = vmatprep.subr.mxu0 0.0
    %386 = vmatpush2.msra.mxu0 0.0
    %387 = vmatprep.subr.mxu0 0.0
    %388 = vmatpush2.msra.mxu0 0.0
    %389 = vmatprep.subr.mxu0 0.0
    %390 = vmatpush2.msra.mxu0 0.0
    %391 = vmatprep.subr.mxu0 0.0
    %392 = vmatpush2.msra.mxu0 0.0
    %393 = vmatprep.subr.mxu0 0.0
    %394 = vmatpush2.msra.mxu0 0.0
    %395 = vmatprep.subr.mxu0 0.0
    %396 = vmatpush2.msra.mxu0 0.0
    %397 = vmatprep.subr.mxu0 0.0
    %398 = vmatpush2.msra.mxu0 0.0
    %399 = vmatprep.subr.mxu0 0.0
    %400 = vmatpush2.msra.mxu0 0.0
    %401 = vmatprep.subr.mxu0 0.0
    %402 = vmatpush2.msra.mxu0 0.0
    %403 = vmatprep.subr.mxu0 0.0
    %404 = vmatpush2.msra.mxu0 0.0
    %405 = vmatprep.subr.mxu0 0.0
    %406 = vmatpush2.msra.mxu0 0.0
    %407 = vmatprep.subr.mxu0 0.0
    %408 = vmatpush2.msra.mxu0 0.0
    %409 = vmatprep.subr.mxu0 0.0
    %410 = vmatpush2.msra.mxu0 0.0
    %411 = vmatprep.subr.mxu0 0.0
    %412 = vmatpush2.msra.mxu0 0.0
    %413 = vmatprep.subr.mxu0 0.0
    %414 = vmatpush2.msra.mxu0 0.0
    %415 = vmatprep.subr.mxu0 0.0
    %416 = vmatpush2.msra.mxu0 0.0
    %417 = vmatprep.mubr.f32.mxu0 0.0
    %418 = vmatmul.mubr.f32.gmra.mxu0 %v351
    %v419 = vpop.f32.mrf.mxu0
    %v420 = vadd.f32 %v347, %v419
    %v421 = vpop.f32.mrf.mxu0
    %422 = vdwg.mxu0
    %v423 = vmax.f32 %v420, 0.0
    %v424 = vld [vmem:[%s9] sm:$0xff]
    %v425 = vld [vmem:[%s9 + $0x8] sm:$0xff]
    %v426 = vld [vmem:[%s9 + $0x10] sm:$0xff]
    %v427 = vld [vmem:[%s9 + $0x18] sm:$0xff]
    %v428 = vld [vmem:[%s9 + $0x20] sm:$0xff]
    %v429 = vld [vmem:[%s9 + $0x28] sm:$0xff]
    %v430 = vld [vmem:[%s9 + $0x30] sm:$0xff]
    %v431 = vld [vmem:[%s9 + $0x38] sm:$0xff]
    %v432 = vld [vmem:[#allocation7] sm:$0x1]
    %v434 = vlaneseq
    %v435 = vshrl.u32 %v434, 7
    %v436 = vsub.s32 0, %v435
    %v437 = vrot.slane %v432, %v436
    %v440 = vsel %vm349, %v423, 0
    %442 = vmatprep.subr.mxu0 0.0
    %443 = vmatpush1.msra.mxu0 0.0
    %444 = vmatprep.subr.mxu0 0.0
    %445 = vmatpush1.msra.mxu0 0.0
    %446 = vmatprep.subr.mxu0 0.0
    %447 = vmatpush1.msra.mxu0 0.0
    %448 = vmatprep.subr.mxu0 0.0
    %449 = vmatpush1.msra.mxu0 0.0
    %450 = vmatprep.subr.mxu0 0.0
    %451 = vmatpush1.msra.mxu0 0.0
    %452 = vmatprep.subr.mxu0 0.0
    %453 = vmatpush1.msra.mxu0 0.0
    %454 = vmatprep.subr.mxu0 0.0
    %455 = vmatpush1.msra.mxu0 0.0
    %456 = vmatprep.subr.mxu0 0.0
    %457 = vmatpush1.msra.mxu0 0.0
    %458 = vmatprep.subr.mxu0 0.0
    %459 = vmatpush1.msra.mxu0 %v431
    %460 = vmatprep.subr.mxu0 0.0
    %461 = vmatpush1.msra.mxu0 %v430
    %462 = vmatprep.subr.mxu0 0.0
    %463 = vmatpush1.msra.mxu0 %v429
    %464 = vmatprep.subr.mxu0 0.0
    %465 = vmatpush1.msra.mxu0 %v428
    %466 = vmatprep.subr.mxu0 0.0
    %467 = vmatpush1.msra.mxu0 %v427
    %468 = vmatprep.subr.mxu0 0.0
    %469 = vmatpush1.msra.mxu0 %v426
    %470 = vmatprep.subr.mxu0 0.0
    %471 = vmatpush1.msra.mxu0 %v425
    %472 = vmatprep.subr.mxu0 0.0
    %473 = vmatpush1.msra.mxu0 %v424
    %474 = vmatprep.subr.mxu0 0.0
    %475 = vmatpush2.msra.mxu0 0.0
    %476 = vmatprep.subr.mxu0 0.0
    %477 = vmatpush2.msra.mxu0 0.0
    %478 = vmatprep.subr.mxu0 0.0
    %479 = vmatpush2.msra.mxu0 0.0
    %480 = vmatprep.subr.mxu0 0.0
    %481 = vmatpush2.msra.mxu0 0.0
    %482 = vmatprep.subr.mxu0 0.0
    %483 = vmatpush2.msra.mxu0 0.0
    %484 = vmatprep.subr.mxu0 0.0
    %485 = vmatpush2.msra.mxu0 0.0
    %486 = vmatprep.subr.mxu0 0.0
    %487 = vmatpush2.msra.mxu0 0.0
    %488 = vmatprep.subr.mxu0 0.0
    %489 = vmatpush2.msra.mxu0 0.0
    %490 = vmatprep.subr.mxu0 0.0
    %491 = vmatpush2.msra.mxu0 0.0
    %492 = vmatprep.subr.mxu0 0.0
    %493 = vmatpush2.msra.mxu0 0.0
    %494 = vmatprep.subr.mxu0 0.0
    %495 = vmatpush2.msra.mxu0 0.0
    %496 = vmatprep.subr.mxu0 0.0
    %497 = vmatpush2.msra.mxu0 0.0
    %498 = vmatprep.subr.mxu0 0.0
    %499 = vmatpush2.msra.mxu0 0.0
    %500 = vmatprep.subr.mxu0 0.0
    %501 = vmatpush2.msra.mxu0 0.0
    %502 = vmatprep.subr.mxu0 0.0
    %503 = vmatpush2.msra.mxu0 0.0
    %504 = vmatprep.subr.mxu0 0.0
    %505 = vmatpush2.msra.mxu0 0.0
    %506 = vmatprep.mubr.f32.mxu0 0.0
    %507 = vmatmul.mubr.f32.gmra.mxu0 %v440
    %v508 = vpop.f32.mrf.mxu0
    %v509 = vadd.f32 %v437, %v508
    %v510 = vpop.f32.mrf.mxu0
    %511 = vdwg.mxu0
    %vm512 = vcmask 15360
    %513 = vst.msk [vmem:[%s11] sm:$0xff] %vm512, %v509
    // Predicated region
    $region62: #{critic_forward.1} parent=1 // pred_check
      _
    $region63: #{critic_forward.1} parent=1 // pred_check_branch
      %515 = sbr.rel (0) target = $region65
    $region64: #{critic_forward.1} parent=1 // pred_region
      _
    $region65: #{critic_forward.1} parent=1 // pred_fallthru
      _
    // Predicated region
    $region66: #{critic_forward.1} parent=1 // pred_check
      _
    $region67: #{critic_forward.1} parent=1 // pred_check_branch
      %517 = sbr.rel (0) target = $region69
    $region68: #{critic_forward.1} parent=1 // pred_region
      _
    $region69: #{critic_forward.1} parent=1 // pred_fallthru
      _
    %518 = vsyncpa [#allocation3], 1
    %519 = vsyncpa [#allocation5], 1
    %520 = vsyncpa [#allocation8], 1

</llo_original>
